<compile_context>
chip_gen: v7x
topology: tpu7x:2x2x1
jax: 0.10.0
libtpu: 0.0.40
codegen_flags: <defaults>
</compile_context>

<pallas_src>
import functools

import numpy as np
import jax
import jax.numpy as jnp
from jax.experimental import pallas as pl
from jax.experimental.pallas import tpu as pltpu


def _shortcut_kernel(x_ref, sel_ref, o_ref, *, nb, cin, pad):
    """One grid step = `nb` batch samples.

    x_ref  : (nb*cin, H*W)           input rows (sample-major), spatial on lanes
    sel_ref: (H*W, Ho*Wo)            one-hot ::2,::2 selection (grid-invariant)
    o_ref  : (nb, cin+2*pad, Ho*Wo)  zero-channel-padded output block
    """
    hwo = o_ref.shape[2]
    # Stride-2 spatial gather for all nb*cin rows in ONE MXU matmul.
    # Exact: each sel column holds exactly one 1.0 (true for f32 and bf16).
    res = jnp.dot(x_ref[...], sel_ref[...],
                  preferred_element_type=jnp.float32).astype(o_ref.dtype)

    if pad > 0:
        # Direct sliced stores for the zero channels (no concatenate temporary).
        zeros = jnp.zeros((o_ref.shape[0], pad, hwo), dtype=o_ref.dtype)
        o_ref[:, :pad, :] = zeros
        o_ref[:, pad + cin:, :] = zeros

    # Scatter each sample's cin rows into its padded channel slot.
    # Static unrolled loop; nb is capped (<= 64) by the block picker.
    for s in range(nb):
        o_ref[s, pad:pad + cin, :] = res[s * cin:(s + 1) * cin, :]


def _pick_samples_per_step(n, c, c_out, hw, hwo, itemsize):
    """Samples per grid step: divides n, feeds the MXU M-dim, fits a VMEM
    budget, satisfies the (8,128) block rule, and prefers >= 2 grid steps
    (v7x has two TensorCores and the batch axis is marked "parallel")."""
    target = min(64, max(1, -(-256 // max(c, 1))))         # nb*c >= 256, unroll cap
    per_sample = 2 * (c * hw + c_out * hwo) * itemsize      # double-buffered in+out
    by_vmem = max(1, (12 * 1024 * 1024) // max(per_sample, 1))
    cap = max(1, min(n, target, by_vmem))
    prefer = min(cap, max(1, n // 2)) if n >= 2 else cap

    def ok(d):
        # Full blocks only; the input block's second-minor dim (d*c) must be a
        # multiple of 8 unless it equals the full array dim (d == n).
        return n % d == 0 and ((d * c) % 8 == 0 or d == n)

    for d in range(prefer, 0, -1):
        if ok(d):
            return d
    for d in range(cap, 0, -1):
        if ok(d):
            return d
    return n


@functools.partial(jax.jit, static_argnums=1)
def lambda_layer_shortcut(x, planes):
    """Equivalent of LambdaLayer(lambda x: F.pad(x[:, :, ::2, ::2],
    (0, 0, 0, 0, planes//4, planes//4), 'constant', 0)) for NCHW input `x`."""
    n, c, h, w = x.shape
    pad = planes // 4
    c_out = c + 2 * pad
    h_out = (h + 1) // 2            # ceil: matches PyTorch ::2 for odd sizes
    w_out = (w + 1) // 2
    hw, hwo = h * w, h_out * w_out
    isz = jnp.dtype(x.dtype).itemsize

    nb = _pick_samples_per_step(n, c, c_out, hw, hwo, isz)
    grid = (n // nb,)

    # One-hot selection: sel[h*W + w, ho*Wo + wo] = (h == 2*ho) & (w == 2*wo).
    # Built with numpy on the host -> baked compile-time constant.
    sel_h = np.arange(h)[:, None] == 2 * np.arange(h_out)[None, :]
    sel_w = np.arange(w)[:, None] == 2 * np.arange(w_out)[None, :]
    sel_np = (sel_h[:, None, :, None] & sel_w[None, :, None, :]).reshape(hw, hwo)
    sel = jnp.asarray(sel_np, dtype=x.dtype)

    x2d = x.reshape(n * c, hw)      # free reshape: lane-dense flattened spatial

    kernel = functools.partial(_shortcut_kernel, nb=nb, cin=c, pad=pad)

    # Explicit VMEM budget (keeps headroom on v7x's 64 MiB physical VMEM).
    vmem_need = (2 * nb * (c * hw + c_out * hwo) + 2 * hw * hwo) * isz + (2 << 20)
    vmem_limit = int(min(max(vmem_need, 16 * 1024 * 1024), 64 * 1024 * 1024))

    cost = pl.CostEstimate(
        flops=2 * n * c * hw * hwo,
        transcendentals=0,
        bytes_accessed=(n * c * hw + hw * hwo + n * c_out * hwo) * isz,
    )

    out = pl.pallas_call(
        kernel,
        out_shape=jax.ShapeDtypeStruct((n, c_out, hwo), x.dtype),
        grid=grid,
        in_specs=[
            # nb samples per step: one large contiguous DMA of (nb*c, hw)
            pl.BlockSpec((nb * c, hw), lambda i: (i, 0)),
            # grid-invariant selection matrix: fetched once, stays VMEM-resident
            pl.BlockSpec((hw, hwo), lambda i: (0, 0)),
        ],
        out_specs=pl.BlockSpec((nb, c_out, hwo), lambda i: (i, 0, 0)),
        compiler_params=pltpu.CompilerParams(
            dimension_semantics=("parallel",),
            vmem_limit_bytes=vmem_limit,
        ),
        cost_estimate=cost,
    )(x2d, sel)

    # free reshape back to NCHW output layout
    return out.reshape(n, c_out, h_out, w_out)


if __name__ == "__main__":
    key = jax.random.PRNGKey(0)
    N, C, H, W = 2, 4, 16, 16
    planes = 8                      # option-A shortcut: pad = planes // 4 = 2
    pad = planes // 4

    x = jax.random.normal(key, (N, C, H, W), dtype=jnp.float32)
    y = jax.block_until_ready(lambda_layer_shortcut(x, planes))

    expected = jnp.pad(
        x[:, :, ::2, ::2], ((0, 0), (pad, pad), (0, 0), (0, 0)), mode="constant"
    )
    assert y.shape == expected.shape, (y.shape, expected.shape)
    assert y.dtype == x.dtype
    assert jnp.allclose(y, expected), "Pallas kernel mismatch vs reference"

    # odd spatial dims: ::2 takes ceil(H/2) x ceil(W/2) rows/cols
    x_odd = jax.random.normal(jax.random.PRNGKey(1), (2, 4, 9, 7), dtype=jnp.float32)
    y_odd = jax.block_until_ready(lambda_layer_shortcut(x_odd, planes))
    exp_odd = jnp.pad(
        x_odd[:, :, ::2, ::2], ((0, 0), (pad, pad), (0, 0), (0, 0)), mode="constant"
    )
    assert y_odd.shape == exp_odd.shape, (y_odd.shape, exp_odd.shape)
    assert jnp.allclose(y_odd, exp_odd), "Pallas kernel mismatch vs reference (odd dims)"

    # larger batch: exercises NB > 1 samples per step and a multi-step grid
    x_big = jax.random.normal(jax.random.PRNGKey(2), (8, 4, 32, 32), dtype=jnp.float32)
    y_big = jax.block_until_ready(lambda_layer_shortcut(x_big, planes))
    exp_big = jnp.pad(
        x_big[:, :, ::2, ::2], ((0, 0), (pad, pad), (0, 0), (0, 0)), mode="constant"
    )
    assert y_big.shape == exp_big.shape, (y_big.shape, exp_big.shape)
    assert jnp.allclose(y_big, exp_big), "Pallas kernel mismatch vs reference (batched)"

    print("KERNEL_OK")
</pallas_src>

<mosaic_0001>
module attributes {stable_mosaic.version = 11 : i64} {
  func.func @_shortcut_kernel(%arg0: i32, %arg1: memref<8x256xf32, #tpu.memory_space<vmem>>, %arg2: memref<256x64xf32, #tpu.memory_space<vmem>>, %arg3: memref<2x8x64xf32, #tpu.memory_space<vmem>>) attributes {dimension_semantics = [#tpu.dimension_semantics<parallel>], iteration_bounds = array<i64: 1>, scalar_prefetch = 0 : i64, scratch_operands = 0 : i64, tpu.core_type = #tpu.core_type<tc>, window_params = [{transform_indices = @transform_0, window_bounds = array<i64: 8, 256>}, {pipeline_mode = #tpu.pipeline_mode<synchronous>, transform_indices = @transform_1, window_bounds = array<i64: 256, 64>}, {transform_indices = @transform_2, window_bounds = array<i64: 2, 8, 64>}]} {
    %c0 = arith.constant 0 : index
    %c0_0 = arith.constant 0 : index
    %0 = vector.load %arg1[%c0, %c0_0] : memref<8x256xf32, #tpu.memory_space<vmem>>, vector<8x256xf32>
    %c0_1 = arith.constant 0 : index
    %c0_2 = arith.constant 0 : index
    %1 = vector.load %arg2[%c0_1, %c0_2] : memref<256x64xf32, #tpu.memory_space<vmem>>, vector<256x64xf32>
    %cst = arith.constant dense<0.000000e+00> : vector<8x64xf32>
    %2 = tpu.matmul %0, %1, %cst {dimension_numbers = #tpu.dot_dimension_numbers<[1], [0], [0], [1], [0, 0, 1, 1], [], []>} : vector<8x256xf32>, vector<256x64xf32>, vector<8x64xf32> -> vector<8x64xf32>
    %cst_3 = arith.constant 0.000000e+00 : f32
    %3 = vector.broadcast %cst_3 : f32 to vector<2x2x64xf32>
    %c0_4 = arith.constant 0 : index
    %c0_5 = arith.constant 0 : index
    %c0_6 = arith.constant 0 : index
    %4 = vector.load %arg3[%c0_4, %c0_5, %c0_6] : memref<2x8x64xf32, #tpu.memory_space<vmem>>, vector<2x2x64xf32>
    tpu.vector_store %arg3[%c0_4, %c0_5, %c0_6], %3 {strides = array<i32>} : memref<2x8x64xf32, #tpu.memory_space<vmem>>, vector<2x2x64xf32>,
    %c0_7 = arith.constant 0 : index
    %c6 = arith.constant 6 : index
    %c0_8 = arith.constant 0 : index
    %5 = vector.load %arg3[%c0_7, %c6, %c0_8] : memref<2x8x64xf32, #tpu.memory_space<vmem>>, vector<2x2x64xf32>
    tpu.vector_store %arg3[%c0_7, %c6, %c0_8], %3 {strides = array<i32>} : memref<2x8x64xf32, #tpu.memory_space<vmem>>, vector<2x2x64xf32>,
    %6 = vector.extract_strided_slice %2 {offsets = [0, 0], sizes = [4, 64], strides = [1, 1]} : vector<8x64xf32> to vector<4x64xf32>
    %c0_9 = arith.constant 0 : index
    %c2 = arith.constant 2 : index
    %c0_10 = arith.constant 0 : index
    %7 = vector.load %arg3[%c0_9, %c2, %c0_10] : memref<2x8x64xf32, #tpu.memory_space<vmem>>, vector<1x4x64xf32>
    %8 = vector.shape_cast %7 : vector<1x4x64xf32> to vector<4x64xf32>
    %9 = vector.shape_cast %6 : vector<4x64xf32> to vector<1x4x64xf32>
    tpu.vector_store %arg3[%c0_9, %c2, %c0_10], %9 {strides = array<i32>} : memref<2x8x64xf32, #tpu.memory_space<vmem>>, vector<1x4x64xf32>,
    %10 = vector.extract_strided_slice %2 {offsets = [4, 0], sizes = [4, 64], strides = [1, 1]} : vector<8x64xf32> to vector<4x64xf32>
    %c1 = arith.constant 1 : index
    %c2_11 = arith.constant 2 : index
    %c0_12 = arith.constant 0 : index
    %11 = vector.load %arg3[%c1, %c2_11, %c0_12] : memref<2x8x64xf32, #tpu.memory_space<vmem>>, vector<1x4x64xf32>
    %12 = vector.shape_cast %11 : vector<1x4x64xf32> to vector<4x64xf32>
    %13 = vector.shape_cast %10 : vector<4x64xf32> to vector<1x4x64xf32>
    tpu.vector_store %arg3[%c1, %c2_11, %c0_12], %13 {strides = array<i32>} : memref<2x8x64xf32, #tpu.memory_space<vmem>>, vector<1x4x64xf32>,
    return
  }
  func.func @transform_0(%arg0: i32) -> (i32, i32) {
    %c0_i32 = arith.constant 0 : i32
    %c0_i32_0 = arith.constant 0 : i32
    return %arg0, %c0_i32 : i32, i32
  }
  func.func @transform_1(%arg0: i32) -> (i32, i32) {
    %c0_i32 = arith.constant 0 : i32
    %c0_i32_0 = arith.constant 0 : i32
    %c0_i32_1 = arith.constant 0 : i32
    return %c0_i32, %c0_i32_0 : i32, i32
  }
  func.func @transform_2(%arg0: i32) -> (i32, i32, i32) {
    %c0_i32 = arith.constant 0 : i32
    %c0_i32_0 = arith.constant 0 : i32
    %c0_i32_1 = arith.constant 0 : i32
    return %arg0, %c0_i32, %c0_i32_0 : i32, i32, i32
  }
}

</mosaic_0001>

<llo_original>
// kernel: lambda_layer_shortcut.1
$region0: #{lambda_layer_shortcut.1}
  #allocation0 [shape = 'u32[]', space=smem, size = 0x4, offset = 0x4, fixed_abs, tag = 'smem constant byte address 0x4 - core index']
  #allocation1 [shape = 'u32[144,128]{1,0:T(1,128)}', space=vmem, size = 0x12000, scoped, tag = 'internal scratch']
  %s0 = inlined_call_operand.vmem [shape: f32[8,256], index: 0, kind: input, shape index: {}]
  %s1 = inlined_call_operand.hbm [shape: f32[256,64], index: 1, kind: input, shape index: {}]
  %s2 = inlined_call_operand.vmem [shape: f32[2,8,64], index: 2, kind: output, shape index: {}]
  %s3 = sld [smem:[#allocation0]]
  $region22: #{lambda_layer_shortcut.1} parent=0
    _
  %s5 = ssub.s32 1, %s3
  %s6 = scalar_select 0, %s5, %s3
  $region1: #{lambda_layer_shortcut.1} parent=0
    #allocation2 [shape = 'u8[131072]{0}', space=vmem, size = 0x20000, scoped, tag = 'input window, operand 1, single buffered']
    #allocation3 [shape = 's32[1]{0}', space=sflag, size = 0x4, scoped, tag = 'scoped memory for lambda_layer_shortcut.1']
    %7 = vsyncpa [#allocation3], 0
    // Predicated region
    $region2: #{lambda_layer_shortcut.1} parent=1 // pred_check
      _
    $region3: #{lambda_layer_shortcut.1} parent=1 // pred_check_branch
      %9 = sbr.rel (0) target = $region5
    $region4: #{lambda_layer_shortcut.1} parent=1 // pred_region
      _
    $region5: #{lambda_layer_shortcut.1} parent=1 // pred_fallthru
      _
    // Predicated region
    $region6: #{lambda_layer_shortcut.1} parent=1 // pred_check
      _
    $region7: #{lambda_layer_shortcut.1} parent=1 // pred_check_branch
      %11 = sbr.rel (0) target = $region9
    $region8: #{lambda_layer_shortcut.1} parent=1 // pred_region
      %s13 = ssub.s32 4096, 4096
      %14 = vsyncadd [#allocation3], %s13
      %s15 = sshll.u32 [#allocation2], 4
      %s16 = int_to_ptr.vmem [resolvable:$true] %s15
      %21 = dma.hbm_to_vmem [thread:$0]  %s1, 4096, %s16, [#allocation3], 128, 128, 8
    $region9: #{lambda_layer_shortcut.1} parent=1 // pred_fallthru
      _
    // Predicated region
    $region10: #{lambda_layer_shortcut.1} parent=1 // pred_check
      _
    $region11: #{lambda_layer_shortcut.1} parent=1 // pred_check_branch
      %23 = sbr.rel (0) target = $region13
    $region12: #{lambda_layer_shortcut.1} parent=1 // pred_region
      %24 = dma.done [#allocation3], 4096
    $region13: #{lambda_layer_shortcut.1} parent=1 // pred_fallthru
      _
    %v25 = vld [vmem:[%s0] sm:$0xff]
    %v26 = vld [vmem:[%s0 + $0x8] sm:$0xff]
    %v27 = vld [vmem:[#allocation2] sm:$0xff]
    %v28 = vld [vmem:[#allocation2 + $0x8] sm:$0xff]
    %v29 = vld [vmem:[#allocation2 + $0x10] sm:$0xff]
    %v30 = vld [vmem:[#allocation2 + $0x18] sm:$0xff]
    %v31 = vld [vmem:[#allocation2 + $0x20] sm:$0xff]
    %v32 = vld [vmem:[#allocation2 + $0x28] sm:$0xff]
    %v33 = vld [vmem:[#allocation2 + $0x30] sm:$0xff]
    %v34 = vld [vmem:[#allocation2 + $0x38] sm:$0xff]
    %v35 = vld [vmem:[#allocation2 + $0x40] sm:$0xff]
    %v36 = vld [vmem:[#allocation2 + $0x48] sm:$0xff]
    %v37 = vld [vmem:[#allocation2 + $0x50] sm:$0xff]
    %v38 = vld [vmem:[#allocation2 + $0x58] sm:$0xff]
    %v39 = vld [vmem:[#allocation2 + $0x60] sm:$0xff]
    %v40 = vld [vmem:[#allocation2 + $0x68] sm:$0xff]
    %v41 = vld [vmem:[#allocation2 + $0x70] sm:$0xff]
    %v42 = vld [vmem:[#allocation2 + $0x78] sm:$0xff]
    %v43 = vld [vmem:[#allocation2 + $0x80] sm:$0xff]
    %v44 = vld [vmem:[#allocation2 + $0x88] sm:$0xff]
    %v45 = vld [vmem:[#allocation2 + $0x90] sm:$0xff]
    %v46 = vld [vmem:[#allocation2 + $0x98] sm:$0xff]
    %v47 = vld [vmem:[#allocation2 + $0xa0] sm:$0xff]
    %v48 = vld [vmem:[#allocation2 + $0xa8] sm:$0xff]
    %v49 = vld [vmem:[#allocation2 + $0xb0] sm:$0xff]
    %v50 = vld [vmem:[#allocation2 + $0xb8] sm:$0xff]
    %v51 = vld [vmem:[#allocation2 + $0xc0] sm:$0xff]
    %v52 = vld [vmem:[#allocation2 + $0xc8] sm:$0xff]
    %v53 = vld [vmem:[#allocation2 + $0xd0] sm:$0xff]
    %v54 = vld [vmem:[#allocation2 + $0xd8] sm:$0xff]
    %v55 = vld [vmem:[#allocation2 + $0xe0] sm:$0xff]
    %v56 = vld [vmem:[#allocation2 + $0xe8] sm:$0xff]
    %v57 = vld [vmem:[#allocation2 + $0xf0] sm:$0xff]
    %v58 = vld [vmem:[#allocation2 + $0xf8] sm:$0xff]
    %59 = vmatprep.subr.mxu0 0.0
    %60 = vmatpush1.msra.mxu0 %v27
    %61 = vmatprep.subr.mxu0 0.0
    %62 = vmatpush1.msra.mxu0 %v28
    %63 = vmatprep.subr.mxu0 0.0
    %64 = vmatpush1.msra.mxu0 %v29
    %65 = vmatprep.subr.mxu0 0.0
    %66 = vmatpush1.msra.mxu0 %v30
    %67 = vmatprep.subr.mxu0 0.0
    %68 = vmatpush1.msra.mxu0 %v31
    %69 = vmatprep.subr.mxu0 0.0
    %70 = vmatpush1.msra.mxu0 %v32
    %71 = vmatprep.subr.mxu0 0.0
    %72 = vmatpush1.msra.mxu0 %v33
    %73 = vmatprep.subr.mxu0 0.0
    %74 = vmatpush1.msra.mxu0 %v34
    %75 = vmatprep.subr.mxu0 0.0
    %76 = vmatpush1.msra.mxu0 %v35
    %77 = vmatprep.subr.mxu0 0.0
    %78 = vmatpush1.msra.mxu0 %v36
    %79 = vmatprep.subr.mxu0 0.0
    %80 = vmatpush1.msra.mxu0 %v37
    %81 = vmatprep.subr.mxu0 0.0
    %82 = vmatpush1.msra.mxu0 %v38
    %83 = vmatprep.subr.mxu0 0.0
    %84 = vmatpush1.msra.mxu0 %v39
    %85 = vmatprep.subr.mxu0 0.0
    %86 = vmatpush1.msra.mxu0 %v40
    %87 = vmatprep.subr.mxu0 0.0
    %88 = vmatpush1.msra.mxu0 %v41
    %89 = vmatprep.subr.mxu0 0.0
    %90 = vmatpush1.msra.mxu0 %v42
    %91 = vmatprep.subr.mxu0 0.0
    %92 = vmatpush1.msra.mxu0 %v43
    %93 = vmatprep.subr.mxu0 0.0
    %94 = vmatpush1.msra.mxu0 %v44
    %95 = vmatprep.subr.mxu0 0.0
    %96 = vmatpush1.msra.mxu0 %v45
    %97 = vmatprep.subr.mxu0 0.0
    %98 = vmatpush1.msra.mxu0 %v46
    %99 = vmatprep.subr.mxu0 0.0
    %100 = vmatpush1.msra.mxu0 %v47
    %101 = vmatprep.subr.mxu0 0.0
    %102 = vmatpush1.msra.mxu0 %v48
    %103 = vmatprep.subr.mxu0 0.0
    %104 = vmatpush1.msra.mxu0 %v49
    %105 = vmatprep.subr.mxu0 0.0
    %106 = vmatpush1.msra.mxu0 %v50
    %107 = vmatprep.subr.mxu0 0.0
    %108 = vmatpush1.msra.mxu0 %v51
    %109 = vmatprep.subr.mxu0 0.0
    %110 = vmatpush1.msra.mxu0 %v52
    %111 = vmatprep.subr.mxu0 0.0
    %112 = vmatpush1.msra.mxu0 %v53
    %113 = vmatprep.subr.mxu0 0.0
    %114 = vmatpush1.msra.mxu0 %v54
    %115 = vmatprep.subr.mxu0 0.0
    %116 = vmatpush1.msra.mxu0 %v55
    %117 = vmatprep.subr.mxu0 0.0
    %118 = vmatpush1.msra.mxu0 %v56
    %119 = vmatprep.subr.mxu0 0.0
    %120 = vmatpush1.msra.mxu0 %v57
    %121 = vmatprep.subr.mxu0 0.0
    %122 = vmatpush1.msra.mxu0 %v58
    %123 = vmatprep.mubr.f32.mxu0 %v26
    %124 = vmatmul.mubr.f32.gmra.mrb[0].mxu0 %v25
    %v125 = vpop.f32.mrb[0].mxu0
    %v126 = vadd.f32 0.0, %v125
    %v127 = vpop.f32.mrb[0].mxu0
    %128 = vdwg.mxu0
    %vm129 = vcmask 517120
    %130 = vst.msk [vmem:[%s2] sm:$0x3] %vm129, 0.0
    %131 = vst.msk [vmem:[%s2 + $0x8] sm:$0x3] %vm129, 0.0
    %132 = vst.msk [vmem:[%s2 + $0x6] sm:$0x3] %vm129, 0.0
    %133 = vst.msk [vmem:[%s2 + $0xe] sm:$0x3] %vm129, 0.0
    %vm134 = vcmask 519168
    %135 = vst.msk [vmem:[%s2 + $0x2] sm:$0xf] %vm134, %v126
    %s136 = scalar_lea.vmem %s2, 8
    %vm137 = vcmask 523268
    %138 = vst.msk [vmem:[%s136 - $0x2] sm:$0xf0] %vm137, %v126
    // Predicated region
    $region14: #{lambda_layer_shortcut.1} parent=1 // pred_check
      _
    $region15: #{lambda_layer_shortcut.1} parent=1 // pred_check_branch
      %140 = sbr.rel (0) target = $region17
    $region16: #{lambda_layer_shortcut.1} parent=1 // pred_region
      _
    $region17: #{lambda_layer_shortcut.1} parent=1 // pred_fallthru
      _
    // Predicated region
    $region18: #{lambda_layer_shortcut.1} parent=1 // pred_check
      _
    $region19: #{lambda_layer_shortcut.1} parent=1 // pred_check_branch
      %142 = sbr.rel (0) target = $region21
    $region20: #{lambda_layer_shortcut.1} parent=1 // pred_region
      _
    $region21: #{lambda_layer_shortcut.1} parent=1 // pred_fallthru
      _
    %143 = vsyncpa [#allocation3], 1

</llo_original>
